<compile_context>
chip_gen: v7x
topology: tpu7x:2x2x1
jax: 0.10.0
libtpu: 0.0.40
codegen_flags: <defaults>
</compile_context>

<pallas_src>
import functools

import jax
import jax.numpy as jnp
from jax import lax
from jax.experimental import pallas as pl
from jax.experimental.pallas import tpu as pltpu


def _round_up(x, m):
    return ((x + m - 1) // m) * m


def _dice_partials_kernel(x_ref, t_ref, inter_ref, z_ref, y_ref, *,
                          apply_softmax, n_valid, tile_n, ragged):
    """Accumulate per-class partial sums over the flattened spatial axis.

    x_ref:     (C, TN) scores for TN pixels of one batch element
    t_ref:     (1, TN) integer class labels (int8/uint8/int32)
    inter_ref: (C, 1)  resident accum of sum(score * onehot)
    z_ref:     (C, 1)  resident accum of sum(score * score)
    y_ref:     (C, 1)  resident accum of sum(onehot)  (== sum(onehot^2))
    """
    j = pl.program_id(1)

    @pl.when(j == 0)
    def _():
        inter_ref[...] = jnp.zeros_like(inter_ref)
        z_ref[...] = jnp.zeros_like(z_ref)
        y_ref[...] = jnp.zeros_like(y_ref)

    score = x_ref[...].astype(jnp.float32)          # (C, TN)
    labels = t_ref[...].astype(jnp.int32)           # (1, TN)
    c = score.shape[0]

    if apply_softmax:
        # softmax over the class dim (axis 0) == torch.softmax(inputs, dim=1)
        m = jnp.max(score, axis=0, keepdims=True)
        e = jnp.exp(score - m)
        score = e * pl.reciprocal(jnp.sum(e, axis=0, keepdims=True),
                                  approx=False)

    class_ids = lax.broadcasted_iota(jnp.int32, (c, 1), 0)       # (C, 1)

    def _accumulate(s, onehot):
        inter_ref[...] += jnp.sum(s * onehot, axis=1, keepdims=True)
        z_ref[...] += jnp.sum(s * s, axis=1, keepdims=True)
        y_ref[...] += jnp.sum(onehot, axis=1, keepdims=True)

    if not ragged:
        # HW is a multiple of tile_n: every tile fully valid, no masking.
        _accumulate(score, (labels == class_ids).astype(jnp.float32))
    else:
        last = pl.num_programs(1) - 1

        @pl.when(j < last)
        def _():
            _accumulate(score, (labels == class_ids).astype(jnp.float32))

        @pl.when(j == last)
        def _():
            # Final tile extends past HW; Pallas block padding is garbage, so
            # mask invalid columns out of both the score and the one-hot.
            col = j * tile_n + lax.broadcasted_iota(
                jnp.int32, (1, score.shape[1]), 1)
            valid = col < n_valid                                 # (1, TN)
            s = jnp.where(valid, score, 0.0)
            onehot = jnp.where(valid, labels == class_ids,
                               False).astype(jnp.float32)
            _accumulate(s, onehot)


def dice_loss(inputs, target, weight=None, softmax=False, smooth=1e-5,
              tile_n=None):
    """Pallas equivalent of DiceLoss(n_classes=C).forward(inputs, target, weight, softmax).

    inputs: (B, C, H, W) float   target: (B, H, W) integer class labels
    Returns scalar loss (float32).
    """
    B, C, H, W = inputs.shape
    assert target.shape == (B, H, W), (inputs.shape, target.shape)
    HW = H * W

    # Free reshapes only -- no transpose / pad / dtype-widening HBM passes.
    x = inputs.reshape(B, C, HW)
    t = target.reshape(B, 1, HW)
    if t.dtype not in (jnp.int8, jnp.uint8, jnp.int32):
        t = t.astype(jnp.int32)

    if tile_n is None:
        # Biggest lane-tile that keeps the double-buffered input streams within
        # a conservative VMEM budget (safe on v5e/v6e/v7x default scoped VMEM).
        vmem_budget = 8 * 1024 * 1024
        bytes_per_col = 2 * (C * x.dtype.itemsize + t.dtype.itemsize)
        tile_n = min(vmem_budget // bytes_per_col, 8192)
    tile_n = min(int(tile_n), _round_up(HW, 128))
    tile_n = max(128, (tile_n // 128) * 128)

    num_tiles = -(-HW // tile_n)
    ragged = (HW % tile_n) != 0

    # TODO(synk): pass n_valid via scalar prefetch (SMEM) if (B, H, W) varies
    # across calls, to avoid per-shape recompilation.
    kernel = functools.partial(
        _dice_partials_kernel,
        apply_softmax=softmax,
        n_valid=HW,
        tile_n=tile_n,
        ragged=ragged,
    )

    acc_spec = pl.BlockSpec((pl.Squeezed(), C, 1), lambda b, j: (b, 0, 0))
    acc_shape = jax.ShapeDtypeStruct((B, C, 1), jnp.float32)

    inter_p, z_p, y_p = pl.pallas_call(
        kernel,
        out_shape=(acc_shape, acc_shape, acc_shape),
        grid_spec=pltpu.PrefetchScalarGridSpec(
            num_scalar_prefetch=0,
            grid=(B, num_tiles),
            in_specs=[
                pl.BlockSpec((pl.Squeezed(), C, tile_n),
                             lambda b, j: (b, 0, j)),
                pl.BlockSpec((pl.Squeezed(), 1, tile_n),
                             lambda b, j: (b, 0, j)),
            ],
            out_specs=(acc_spec, acc_spec, acc_spec),
        ),
        compiler_params=pltpu.CompilerParams(
            # Batch axis is independent (per-batch accumulators) -> megacore
            # may split it across TensorCores; the spatial-tile axis is the
            # reduction axis and stays "arbitrary".
            dimension_semantics=("parallel", "arbitrary"),
        ),
    )(x, t)

    intersect = jnp.sum(inter_p, axis=0)[:, 0]       # (C,)
    z_sum = jnp.sum(z_p, axis=0)[:, 0]
    y_sum = jnp.sum(y_p, axis=0)[:, 0]

    dice = 1.0 - (2.0 * intersect + smooth) / (z_sum + y_sum + smooth)

    if weight is None:
        weight = jnp.ones((C,), jnp.float32)
    else:
        weight = jnp.asarray(weight, jnp.float32)

    return jnp.sum(dice * weight) / C


# ----------------------------------------------------------------------------
# Pure-JAX reference mirroring the PyTorch module (for verification).
# ----------------------------------------------------------------------------
def dice_loss_ref(inputs, target, weight=None, softmax=False, smooth=1e-5):
    B, C, H, W = inputs.shape
    x = inputs.astype(jnp.float32)
    if softmax:
        x = jax.nn.softmax(x, axis=1)
    onehot = (target[:, None, :, :] ==
              jnp.arange(C)[None, :, None, None]).astype(jnp.float32)
    if weight is None:
        weight = jnp.ones((C,), jnp.float32)
    else:
        weight = jnp.asarray(weight, jnp.float32)
    loss = 0.0
    for i in range(C):
        s = x[:, i]
        tg = onehot[:, i]
        intersect = jnp.sum(s * tg)
        y_sum = jnp.sum(tg * tg)
        z_sum = jnp.sum(s * s)
        dice = 1.0 - (2.0 * intersect + smooth) / (z_sum + y_sum + smooth)
        loss = loss + dice * weight[i]
    return loss / C


if __name__ == "__main__":
    key = jax.random.PRNGKey(0)
    k1, k2, k3, k4 = jax.random.split(key, 4)

    B, C, H, W = 2, 4, 16, 16

    inputs = jax.random.normal(k1, (B, C, H, W), dtype=jnp.float32)
    # int8 labels: 4x less HBM traffic on the label stream (valid for C <= 127).
    target = jax.random.randint(k2, (B, H, W), 0, C,
                                dtype=jnp.int32).astype(jnp.int8)

    # default path (softmax=False, weight=None)
    out = jax.block_until_ready(dice_loss(inputs, target))
    ref = dice_loss_ref(inputs, target)
    assert jnp.allclose(out, ref, rtol=1e-5, atol=1e-5), (out, ref)

    # softmax path with explicit per-class weights
    w = [1.0, 2.0, 0.5, 1.5]
    out_sm = jax.block_until_ready(
        dice_loss(inputs, target, weight=w, softmax=True))
    ref_sm = dice_loss_ref(inputs, target, weight=w, softmax=True)
    assert jnp.allclose(out_sm, ref_sm, rtol=1e-5, atol=1e-5), (out_sm, ref_sm)

    # ragged-tail path: HW not a multiple of the tile, int32 labels, multiple
    # tiles with a masked final tile.
    Hb, Wb = 6, 30   # HW = 180
    inputs_b = jax.random.normal(k3, (B, C, Hb, Wb), dtype=jnp.float32)
    target_b = jax.random.randint(k4, (B, Hb, Wb), 0, C, dtype=jnp.int32)
    out_b = jax.block_until_ready(
        dice_loss(inputs_b, target_b, softmax=True, tile_n=128))
    ref_b = dice_loss_ref(inputs_b, target_b, softmax=True)
    assert jnp.allclose(out_b, ref_b, rtol=1e-5, atol=1e-5), (out_b, ref_b)

    print("KERNEL_OK")
</pallas_src>

<mosaic_0001>
module attributes {stable_mosaic.version = 11 : i64} {
  func.func @_dice_partials_kernel(%arg0: i32, %arg1: i32, %arg2: memref<1x4x256xf32, #tpu.memory_space<vmem>>, %arg3: memref<1x1x256xi8, #tpu.memory_space<vmem>>, %arg4: memref<1x4x1xf32, #tpu.memory_space<vmem>>, %arg5: memref<1x4x1xf32, #tpu.memory_space<vmem>>, %arg6: memref<1x4x1xf32, #tpu.memory_space<vmem>>) attributes {dimension_semantics = [#tpu.dimension_semantics<parallel>, #tpu.dimension_semantics<arbitrary>], iteration_bounds = array<i64: 2, 1>, scalar_prefetch = 0 : i64, scratch_operands = 0 : i64, tpu.core_type = #tpu.core_type<tc>, window_params = [{transform_indices = @transform_0, window_bounds = array<i64: 1, 4, 256>}, {transform_indices = @transform_1, window_bounds = array<i64: 1, 1, 256>}, {transform_indices = @transform_2, window_bounds = array<i64: 1, 4, 1>}, {transform_indices = @transform_3, window_bounds = array<i64: 1, 4, 1>}, {transform_indices = @transform_4, window_bounds = array<i64: 1, 4, 1>}]} {
    %c0_i32 = arith.constant 0 : i32
    %0 = arith.cmpi eq, %arg1, %c0_i32 : i32
    %1 = arith.extui %0 : i1 to i32
    %c0_i32_0 = arith.constant 0 : i32
    %2 = arith.cmpi ne, %1, %c0_i32_0 : i32
    scf.if %2 {
      %cst_26 = arith.constant 0.000000e+00 : f32
      %40 = vector.broadcast %cst_26 : f32 to vector<4x1xf32>
      %c0_27 = arith.constant 0 : index
      %c0_28 = arith.constant 0 : index
      %c0_29 = arith.constant 0 : index
      %41 = vector.load %arg4[%c0_27, %c0_28, %c0_29] : memref<1x4x1xf32, #tpu.memory_space<vmem>>, vector<1x4x1xf32>
      %42 = vector.shape_cast %41 : vector<1x4x1xf32> to vector<4x1xf32>
      %43 = vector.shape_cast %40 : vector<4x1xf32> to vector<1x4x1xf32>
      tpu.vector_store %arg4[%c0_27, %c0_28, %c0_29], %43 {strides = array<i32>} : memref<1x4x1xf32, #tpu.memory_space<vmem>>, vector<1x4x1xf32>,
      %cst_30 = arith.constant 0.000000e+00 : f32
      %44 = vector.broadcast %cst_30 : f32 to vector<4x1xf32>
      %c0_31 = arith.constant 0 : index
      %c0_32 = arith.constant 0 : index
      %c0_33 = arith.constant 0 : index
      %45 = vector.load %arg5[%c0_31, %c0_32, %c0_33] : memref<1x4x1xf32, #tpu.memory_space<vmem>>, vector<1x4x1xf32>
      %46 = vector.shape_cast %45 : vector<1x4x1xf32> to vector<4x1xf32>
      %47 = vector.shape_cast %44 : vector<4x1xf32> to vector<1x4x1xf32>
      tpu.vector_store %arg5[%c0_31, %c0_32, %c0_33], %47 {strides = array<i32>} : memref<1x4x1xf32, #tpu.memory_space<vmem>>, vector<1x4x1xf32>,
      %cst_34 = arith.constant 0.000000e+00 : f32
      %48 = vector.broadcast %cst_34 : f32 to vector<4x1xf32>
      %c0_35 = arith.constant 0 : index
      %c0_36 = arith.constant 0 : index
      %c0_37 = arith.constant 0 : index
      %49 = vector.load %arg6[%c0_35, %c0_36, %c0_37] : memref<1x4x1xf32, #tpu.memory_space<vmem>>, vector<1x4x1xf32>
      %50 = vector.shape_cast %49 : vector<1x4x1xf32> to vector<4x1xf32>
      %51 = vector.shape_cast %48 : vector<4x1xf32> to vector<1x4x1xf32>
      tpu.vector_store %arg6[%c0_35, %c0_36, %c0_37], %51 {strides = array<i32>} : memref<1x4x1xf32, #tpu.memory_space<vmem>>, vector<1x4x1xf32>,
    } else {
    }
    %c0 = arith.constant 0 : index
    %c0_1 = arith.constant 0 : index
    %c0_2 = arith.constant 0 : index
    %3 = vector.load %arg2[%c0, %c0_1, %c0_2] : memref<1x4x256xf32, #tpu.memory_space<vmem>>, vector<1x4x256xf32>
    %4 = vector.shape_cast %3 : vector<1x4x256xf32> to vector<4x256xf32>
    %c0_3 = arith.constant 0 : index
    %c0_4 = arith.constant 0 : index
    %c0_5 = arith.constant 0 : index
    %5 = vector.load %arg3[%c0_3, %c0_4, %c0_5] : memref<1x1x256xi8, #tpu.memory_space<vmem>>, vector<1x1x256xi8>
    %6 = vector.shape_cast %5 : vector<1x1x256xi8> to vector<1x256xi8>
    %7 = arith.extsi %6 : vector<1x256xi8> to vector<1x256xi32>
    %8 = tpu.iota {dimensions = array<i32: 0>} : vector<4x1xi32>
    %9 = vector.broadcast %7 : vector<1x256xi32> to vector<4x256xi32>
    %10 = vector.broadcast %8 : vector<4x1xi32> to vector<4x256xi32>
    %11 = arith.cmpi eq, %9, %10 : vector<4x256xi32>
    %12 = arith.extui %11 : vector<4x256xi1> to vector<4x256xi32>
    %13 = arith.sitofp %12 : vector<4x256xi32> to vector<4x256xf32>
    %c0_6 = arith.constant 0 : index
    %c0_7 = arith.constant 0 : index
    %c0_8 = arith.constant 0 : index
    %14 = vector.load %arg4[%c0_6, %c0_7, %c0_8] : memref<1x4x1xf32, #tpu.memory_space<vmem>>, vector<1x4x1xf32>
    %15 = vector.shape_cast %14 : vector<1x4x1xf32> to vector<4x1xf32>
    %16 = arith.mulf %4, %13 : vector<4x256xf32>
    %cst = arith.constant dense<0.000000e+00> : vector<4xf32>
    %17 = vector.multi_reduction <add>, %16, %cst [1] : vector<4x256xf32> to vector<4xf32>
    %18 = vector.shape_cast %17 : vector<4xf32> to vector<4x1xf32>
    %19 = arith.addf %15, %18 : vector<4x1xf32>
    %c0_9 = arith.constant 0 : index
    %c0_10 = arith.constant 0 : index
    %c0_11 = arith.constant 0 : index
    %20 = vector.load %arg4[%c0_9, %c0_10, %c0_11] : memref<1x4x1xf32, #tpu.memory_space<vmem>>, vector<1x4x1xf32>
    %21 = vector.shape_cast %20 : vector<1x4x1xf32> to vector<4x1xf32>
    %22 = vector.shape_cast %19 : vector<4x1xf32> to vector<1x4x1xf32>
    tpu.vector_store %arg4[%c0_9, %c0_10, %c0_11], %22 {strides = array<i32>} : memref<1x4x1xf32, #tpu.memory_space<vmem>>, vector<1x4x1xf32>,
    %c0_12 = arith.constant 0 : index
    %c0_13 = arith.constant 0 : index
    %c0_14 = arith.constant 0 : index
    %23 = vector.load %arg5[%c0_12, %c0_13, %c0_14] : memref<1x4x1xf32, #tpu.memory_space<vmem>>, vector<1x4x1xf32>
    %24 = vector.shape_cast %23 : vector<1x4x1xf32> to vector<4x1xf32>
    %25 = arith.mulf %4, %4 : vector<4x256xf32>
    %cst_15 = arith.constant dense<0.000000e+00> : vector<4xf32>
    %26 = vector.multi_reduction <add>, %25, %cst_15 [1] : vector<4x256xf32> to vector<4xf32>
    %27 = vector.shape_cast %26 : vector<4xf32> to vector<4x1xf32>
    %28 = arith.addf %24, %27 : vector<4x1xf32>
    %c0_16 = arith.constant 0 : index
    %c0_17 = arith.constant 0 : index
    %c0_18 = arith.constant 0 : index
    %29 = vector.load %arg5[%c0_16, %c0_17, %c0_18] : memref<1x4x1xf32, #tpu.memory_space<vmem>>, vector<1x4x1xf32>
    %30 = vector.shape_cast %29 : vector<1x4x1xf32> to vector<4x1xf32>
    %31 = vector.shape_cast %28 : vector<4x1xf32> to vector<1x4x1xf32>
    tpu.vector_store %arg5[%c0_16, %c0_17, %c0_18], %31 {strides = array<i32>} : memref<1x4x1xf32, #tpu.memory_space<vmem>>, vector<1x4x1xf32>,
    %c0_19 = arith.constant 0 : index
    %c0_20 = arith.constant 0 : index
    %c0_21 = arith.constant 0 : index
    %32 = vector.load %arg6[%c0_19, %c0_20, %c0_21] : memref<1x4x1xf32, #tpu.memory_space<vmem>>, vector<1x4x1xf32>
    %33 = vector.shape_cast %32 : vector<1x4x1xf32> to vector<4x1xf32>
    %cst_22 = arith.constant dense<0.000000e+00> : vector<4xf32>
    %34 = vector.multi_reduction <add>, %13, %cst_22 [1] : vector<4x256xf32> to vector<4xf32>
    %35 = vector.shape_cast %34 : vector<4xf32> to vector<4x1xf32>
    %36 = arith.addf %33, %35 : vector<4x1xf32>
    %c0_23 = arith.constant 0 : index
    %c0_24 = arith.constant 0 : index
    %c0_25 = arith.constant 0 : index
    %37 = vector.load %arg6[%c0_23, %c0_24, %c0_25] : memref<1x4x1xf32, #tpu.memory_space<vmem>>, vector<1x4x1xf32>
    %38 = vector.shape_cast %37 : vector<1x4x1xf32> to vector<4x1xf32>
    %39 = vector.shape_cast %36 : vector<4x1xf32> to vector<1x4x1xf32>
    tpu.vector_store %arg6[%c0_23, %c0_24, %c0_25], %39 {strides = array<i32>} : memref<1x4x1xf32, #tpu.memory_space<vmem>>, vector<1x4x1xf32>,
    return
  }
  func.func @transform_0(%arg0: i32, %arg1: i32) -> (i32, i32, i32) {
    %c0_i32 = arith.constant 0 : i32
    %c0_i32_0 = arith.constant 0 : i32
    return %arg0, %c0_i32, %arg1 : i32, i32, i32
  }
  func.func @transform_1(%arg0: i32, %arg1: i32) -> (i32, i32, i32) {
    %c0_i32 = arith.constant 0 : i32
    %c0_i32_0 = arith.constant 0 : i32
    return %arg0, %c0_i32, %arg1 : i32, i32, i32
  }
  func.func @transform_2(%arg0: i32, %arg1: i32) -> (i32, i32, i32) {
    %c0_i32 = arith.constant 0 : i32
    %c0_i32_0 = arith.constant 0 : i32
    %c0_i32_1 = arith.constant 0 : i32
    return %arg0, %c0_i32, %c0_i32_0 : i32, i32, i32
  }
  func.func @transform_3(%arg0: i32, %arg1: i32) -> (i32, i32, i32) {
    %c0_i32 = arith.constant 0 : i32
    %c0_i32_0 = arith.constant 0 : i32
    %c0_i32_1 = arith.constant 0 : i32
    return %arg0, %c0_i32, %c0_i32_0 : i32, i32, i32
  }
  func.func @transform_4(%arg0: i32, %arg1: i32) -> (i32, i32, i32) {
    %c0_i32 = arith.constant 0 : i32
    %c0_i32_0 = arith.constant 0 : i32
    %c0_i32_1 = arith.constant 0 : i32
    return %arg0, %c0_i32, %c0_i32_0 : i32, i32, i32
  }
}

</mosaic_0001>

<llo_original>
// kernel: tpu_custom_call.1
$region0: #{tpu_custom_call.1}
  #allocation0 [shape = 'u32[]', space=smem, size = 0x4, offset = 0x4, fixed_abs, tag = 'smem constant byte address 0x4 - core index']
  #allocation1 [shape = 'u32[144,128]{1,0:T(1,128)}', space=vmem, size = 0x12000, scoped, tag = 'internal scratch']
  %s0 = inlined_call_operand.hbm [shape: f32[2,4,256], index: 0, kind: input, shape index: {}]
  %s1 = inlined_call_operand.vmem [shape: s8[2,1,256], index: 1, kind: input, shape index: {}]
  %s2 = inlined_call_operand.vmem [shape: f32[2,4,1], index: 2, kind: output, shape index: {0}]
  %s3 = inlined_call_operand.vmem [shape: f32[2,4,1], index: 3, kind: output, shape index: {1}]
  %s4 = inlined_call_operand.vmem [shape: f32[2,4,1], index: 4, kind: output, shape index: {2}]
  %5 = xla_tuple %s2, %s3, %s4
  %s6 = sld [smem:[#allocation0]]
  $region65: #{tpu_custom_call.1} parent=0
    _
  %s8 = ssub.s32 1, %s6
  %s9 = scalar_select 0, %s8, %s6
  $region1: #{tpu_custom_call.1} parent=0
    #allocation2 [shape = 'u8[8192]{0}', space=vmem, size = 0x2000, scoped, tag = 'input window, operand 0']
    #allocation3 [shape = 's32[2]{0}', space=sflag, size = 0x8, scoped, tag = 'scoped memory for tpu_custom_call.1']
    %10 = vsyncpa [#allocation3], 0
    %s11 = scalar_lea.sflag [#allocation3], 1
    %12 = vsyncpa %s11, 0
    loop: start=0, step=1, limit=4
    $region2: #{tpu_custom_call.1} parent=1 // loop_pre_header
      _
    $region3: #{tpu_custom_call.1} parent=1 // loop_header
      %s14 = sphi 0, %s18
      %p15 = scmp.ge.s32.totalorder %s14, 4
      %s21 = sphi 0, %s33
      %s22 = sphi 0, %s29
      %s23 = sphi 0, %s21
      %s24 = sphi 0, %s22
      %s25 = sphi 0, %s23
      %s26 = sphi 0, %s24
      %s38 = sphi 0, %s40
      %s41 = sphi 0, %s38
      %s42 = sphi 0, %s41
      %s58 = sphi 0, %s42
      %s66 = sphi 0, %s68
      %s69 = sphi 0, %s66
      %s70 = sphi 0, %s69
      %s86 = sphi 0, %s70
      %s92 = sphi 0, %s94
      %s95 = sphi 0, %s92
      %s96 = sphi 0, %s95
      %s112 = sphi 0, %s96
      %s118 = sphi 0, %s120
      %s121 = sphi 0, %s118
      %s122 = sphi 0, %s121
      %s138 = sphi 0, %s122
      %s144 = sphi 0, %s146
      %s147 = sphi 0, %s144
      %s148 = sphi 0, %s147
      %s164 = sphi 0, %s148
    $region4: #{tpu_custom_call.1} parent=1 // loop_header_branch
      %17 = sbr.rel (%p15) target = $region8
    $region5: #{tpu_custom_call.1} parent=1 // loop_body
      %s19 = ssub.s32 %s14, 1
      %s20 = ssub.s32 %s14, 2
      %s27 = sadd.s32 1, %s22
      %p28 = scmp.ge.s32.totalorder %s27, 1
      %s29 = scalar_select %p28, 0, %s27
      %s30 = sadd.s32 1, %s21
      %s31 = scalar_select %p28, %s30, %s21
      %p32 = scmp.ge.s32.totalorder %s31, 2
      %s33 = scalar_select %p32, 0, %s31
      %s34 = ssub.s32 %s21, %s33
      %s35 = ssub.s32 %s22, %s29
      %s36 = sor.u32 %s34, %s35
      %p37 = scmp.eq.s32.totalorder %s36, 0
      %s39 = sadd.s32 %s38, 1
      %s40 = scalar_select %p37, %s38, %s39
      %p43 = pneg %p37
      %p44 = scmp.eq.s32.totalorder %s14, 1
      %p45 = por %p43, %p44
      %p46 = scmp.ne.s32.totalorder %s38, %s41
      %p47 = scmp.eq.s32.totalorder %s14, 0
      %p48 = por %p46, %p47
      %p49 = scmp.ne.s32.totalorder %s38, %s41
      %p50 = scmp.eq.s32.totalorder %s19, 1
      %p51 = por %p49, %p50
      %p52 = scmp.ne.s32.totalorder %s41, %s42
      %p53 = scmp.eq.s32.totalorder %s19, 0
      %p54 = por %p52, %p53
      %p55 = scmp.ne.s32.totalorder %s41, %s42
      %p56 = scmp.eq.s32.totalorder %s20, 1
      %p57 = por %p55, %p56
      %p59 = scmp.ne.s32.totalorder %s42, %s58
      %p60 = scmp.eq.s32.totalorder %s20, 0
      %p61 = por %p59, %p60
      %s62 = ssub.s32 %s21, %s33
      %s63 = ssub.s32 %s22, %s29
      %s64 = sor.u32 %s62, %s63
      %p65 = scmp.eq.s32.totalorder %s64, 0
      %s67 = sadd.s32 %s66, 1
      %s68 = scalar_select %p65, %s66, %s67
      %p71 = pneg %p65
      %p72 = scmp.eq.s32.totalorder %s14, 1
      %p73 = por %p71, %p72
      %p74 = scmp.ne.s32.totalorder %s66, %s69
      %p75 = scmp.eq.s32.totalorder %s14, 0
      %p76 = por %p74, %p75
      %p77 = scmp.ne.s32.totalorder %s66, %s69
      %p78 = scmp.eq.s32.totalorder %s19, 1
      %p79 = por %p77, %p78
      %p80 = scmp.ne.s32.totalorder %s69, %s70
      %p81 = scmp.eq.s32.totalorder %s19, 0
      %p82 = por %p80, %p81
      %p83 = scmp.ne.s32.totalorder %s69, %s70
      %p84 = scmp.eq.s32.totalorder %s20, 1
      %p85 = por %p83, %p84
      %p87 = scmp.ne.s32.totalorder %s70, %s86
      %p88 = scmp.eq.s32.totalorder %s20, 0
      %p89 = por %p87, %p88
      %s90 = ssub.s32 %s21, %s33
      %p91 = scmp.eq.s32.totalorder %s90, 0
      %s93 = sadd.s32 %s92, 1
      %s94 = scalar_select %p91, %s92, %s93
      %p97 = pneg %p91
      %p98 = scmp.eq.s32.totalorder %s14, 1
      %p99 = por %p97, %p98
      %p100 = scmp.ne.s32.totalorder %s92, %s95
      %p101 = scmp.eq.s32.totalorder %s14, 0
      %p102 = por %p100, %p101
      %p103 = scmp.ne.s32.totalorder %s92, %s95
      %p104 = scmp.eq.s32.totalorder %s19, 1
      %p105 = por %p103, %p104
      %p106 = scmp.ne.s32.totalorder %s95, %s96
      %p107 = scmp.eq.s32.totalorder %s19, 0
      %p108 = por %p106, %p107
      %p109 = scmp.ne.s32.totalorder %s95, %s96
      %p110 = scmp.eq.s32.totalorder %s20, 1
      %p111 = por %p109, %p110
      %p113 = scmp.ne.s32.totalorder %s96, %s112
      %p114 = scmp.eq.s32.totalorder %s20, 0
      %p115 = por %p113, %p114
      %s116 = ssub.s32 %s21, %s33
      %p117 = scmp.eq.s32.totalorder %s116, 0
      %s119 = sadd.s32 %s118, 1
      %s120 = scalar_select %p117, %s118, %s119
      %p123 = pneg %p117
      %p124 = scmp.eq.s32.totalorder %s14, 1
      %p125 = por %p123, %p124
      %p126 = scmp.ne.s32.totalorder %s118, %s121
      %p127 = scmp.eq.s32.totalorder %s14, 0
      %p128 = por %p126, %p127
      %p129 = scmp.ne.s32.totalorder %s118, %s121
      %p130 = scmp.eq.s32.totalorder %s19, 1
      %p131 = por %p129, %p130
      %p132 = scmp.ne.s32.totalorder %s121, %s122
      %p133 = scmp.eq.s32.totalorder %s19, 0
      %p134 = por %p132, %p133
      %p135 = scmp.ne.s32.totalorder %s121, %s122
      %p136 = scmp.eq.s32.totalorder %s20, 1
      %p137 = por %p135, %p136
      %p139 = scmp.ne.s32.totalorder %s122, %s138
      %p140 = scmp.eq.s32.totalorder %s20, 0
      %p141 = por %p139, %p140
      %s142 = ssub.s32 %s21, %s33
      %p143 = scmp.eq.s32.totalorder %s142, 0
      %s145 = sadd.s32 %s144, 1
      %s146 = scalar_select %p143, %s144, %s145
      %p149 = pneg %p143
      %p150 = scmp.eq.s32.totalorder %s14, 1
      %p151 = por %p149, %p150
      %p152 = scmp.ne.s32.totalorder %s144, %s147
      %p153 = scmp.eq.s32.totalorder %s14, 0
      %p154 = por %p152, %p153
      %p155 = scmp.ne.s32.totalorder %s144, %s147
      %p156 = scmp.eq.s32.totalorder %s19, 1
      %p157 = por %p155, %p156
      %p158 = scmp.ne.s32.totalorder %s147, %s148
      %p159 = scmp.eq.s32.totalorder %s19, 0
      %p160 = por %p158, %p159
      %p161 = scmp.ne.s32.totalorder %s147, %s148
      %p162 = scmp.eq.s32.totalorder %s20, 1
      %p163 = por %p161, %p162
      %p165 = scmp.ne.s32.totalorder %s148, %s164
      %p166 = scmp.eq.s32.totalorder %s20, 0
      %p167 = por %p165, %p166
      %p168 = scmp.le.s32.totalorder 1, %s14
      %p169 = scmp.lt.s32.totalorder %s14, 3
      %p170 = pnand %p168, %p169
      %p171 = pneg %p170
      // Predicated region
      $region9: #{tpu_custom_call.1} parent=5 // pred_check
        _
      $region10: #{tpu_custom_call.1} parent=5 // pred_check_branch
        %173 = sbr.rel (%p170) target = $region12
      $region11: #{tpu_custom_call.1} parent=5 // pred_region
        %s174 = ssub.s32 %s14, 1
      $region12: #{tpu_custom_call.1} parent=5 // pred_fallthru
        _
      %p175 = scmp.lt.s32.totalorder %s14, 2
      // Predicated region
      $region13: #{tpu_custom_call.1} parent=5 // pred_check
        %p176 = pneg %p175
      $region14: #{tpu_custom_call.1} parent=5 // pred_check_branch
        %178 = sbr.rel (%p176) target = $region16
      $region15: #{tpu_custom_call.1} parent=5 // pred_region
        // Predicated region
        $region17: #{tpu_custom_call.1} parent=15 // pred_check
          %p179 = pneg %p48
        $region18: #{tpu_custom_call.1} parent=15 // pred_check_branch
          %181 = sbr.rel (%p179) target = $region20
        $region19: #{tpu_custom_call.1} parent=15 // pred_region
          %s182 = sand.u32 %s38, 1
          %s183 = scalar_lea.sflag [#allocation3], %s182
          %s184 = sand.u32 %s38, 1
          %s185 = smul.addr %s184, 8
          %s186 = scalar_lea.vmem [#allocation2], %s185
          %s187 = smul.u32 2, %s22
          %s189 = ssub.s32 128, 128
          %190 = vsyncadd %s183, %s189
          %s191 = smul.addr %s21, 2
          %s192 = sadd.s32 %s187, %s191
          %s193 = smul.addr %s192, 64
          %s194 = scalar_lea.hbm %s0, %s193
          %s196 = sshll.u32 %s186, 4
          %s197 = int_to_ptr.vmem [resolvable:$true] %s196
          %199 = dma.hbm_to_vmem [thread:$0]  %s194, 128, %s197, %s183
        $region20: #{tpu_custom_call.1} parent=15 // pred_fallthru
          _
        // Predicated region
        $region21: #{tpu_custom_call.1} parent=15 // pred_check
          %p200 = pneg %p76
        $region22: #{tpu_custom_call.1} parent=15 // pred_check_branch
          %202 = sbr.rel (%p200) target = $region24
        $region23: #{tpu_custom_call.1} parent=15 // pred_region
          %s203 = smul.u32 2, %s22
          %p204 = scmp.lt.s32.totalorder %s21, 1
          %s205 = scalar_select %p204, %s21, 1
          %p206 = scmp.lt.s32.totalorder %s203, 1
          %s207 = scalar_select %p206, %s203, 1
          %s208 = smul.addr %s205, 2
          %s209 = sadd.s32 %s207, %s208
          %s210 = scalar_lea.vmem %s1, %s209
          %s211 = smul.u32 2, %s22
        $region24: #{tpu_custom_call.1} parent=15 // pred_fallthru
          _
      $region16: #{tpu_custom_call.1} parent=5 // pred_fallthru
        _
      %p212 = scmp.le.s32.totalorder 1, %s14
      %p213 = scmp.lt.s32.totalorder %s14, 3
      %p214 = pnand %p212, %p213
      %p215 = pneg %p214
      // Predicated region
      $region25: #{tpu_custom_call.1} parent=5 // pred_check
        _
      $region26: #{tpu_custom_call.1} parent=5 // pred_check_branch
        %217 = sbr.rel (%p214) target = $region28
      $region27: #{tpu_custom_call.1} parent=5 // pred_region
        %s218 = ssub.s32 %s14, 1
        %s219 = sand.u32 %s41, 1
        %s220 = scalar_lea.sflag [#allocation3], %s219
        %s221 = sand.u32 %s41, 1
        %s222 = smul.addr %s221, 8
        %s223 = scalar_lea.vmem [#allocation2], %s222
        // Predicated region
        $region29: #{tpu_custom_call.1} parent=27 // pred_check
          %p224 = pneg %p54
        $region30: #{tpu_custom_call.1} parent=27 // pred_check_branch
          %226 = sbr.rel (%p224) target = $region32
        $region31: #{tpu_custom_call.1} parent=27 // pred_region
          %227 = dma.done %s220, 128
        $region32: #{tpu_custom_call.1} parent=27 // pred_fallthru
          _
        %s228 = sand.u32 %s41, 1
        %s229 = scalar_lea.sflag [#allocation3], %s228
        %s230 = sand.u32 %s41, 1
        %s231 = smul.addr %s230, 8
        %s232 = scalar_lea.vmem [#allocation2], %s231
        %p233 = pneg %p54
        %p234 = pneg %p51
        %s235 = smul.u32 2, %s24
        %p236 = scmp.lt.s32.totalorder %s23, 1
        %s237 = scalar_select %p236, %s23, 1
        %p238 = scmp.lt.s32.totalorder %s235, 1
        %s239 = scalar_select %p238, %s235, 1
        %s240 = smul.addr %s237, 2
        %s241 = sadd.s32 %s239, %s240
        %s242 = scalar_lea.vmem %s1, %s241
        %p243 = pneg %p82
        %p244 = pneg %p79
        %p245 = pneg %p108
        %p246 = pneg %p105
        %p247 = scmp.lt.s32.totalorder %s23, 1
        %s248 = scalar_select %p247, %s23, 1
        %s249 = smul.addr %s248, 4
        %s250 = scalar_lea.vmem %s2, %s249
        %p251 = pneg %p134
        %p252 = pneg %p131
        %p253 = scmp.lt.s32.totalorder %s23, 1
        %s254 = scalar_select %p253, %s23, 1
        %s255 = smul.addr %s254, 4
        %s256 = scalar_lea.vmem %s3, %s255
        %p257 = pneg %p160
        %p258 = pneg %p157
        %p259 = scmp.lt.s32.totalorder %s23, 1
        %s260 = scalar_select %p259, %s23, 1
        %s261 = smul.addr %s260, 4
        %s262 = scalar_lea.vmem %s4, %s261
        %s263 = smul.u32 2, %s24
        %s264 = smul.u32 2, %s24
        %p265 = scmp.lt.s32.totalorder %s23, 1
        %s266 = scalar_select %p265, %s23, 1
        %p267 = scmp.lt.s32.totalorder %s264, 1
        %s268 = scalar_select %p267, %s264, 1
        %s269 = smul.addr %s266, 2
        %s270 = sadd.s32 %s268, %s269
        %s271 = scalar_lea.vmem %s1, %s270
        %s272 = smul.u32 2, %s24
        %p273 = scmp.lt.s32.totalorder %s23, 1
        %s274 = scalar_select %p273, %s23, 1
        %s275 = smul.addr %s274, 4
        %s276 = scalar_lea.vmem %s2, %s275
        %p277 = scmp.lt.s32.totalorder %s23, 1
        %s278 = scalar_select %p277, %s23, 1
        %s279 = smul.addr %s278, 4
        %s280 = scalar_lea.vmem %s3, %s279
        %p281 = scmp.lt.s32.totalorder %s23, 1
        %s282 = scalar_select %p281, %s23, 1
        %s283 = smul.addr %s282, 4
        %s284 = scalar_lea.vmem %s4, %s283
        %p285 = scmp.eq.s32.totalorder %s24, 0
        // Predicated region
        $region33: #{tpu_custom_call.1} parent=27 // pred_check
          %p286 = pneg %p285
        $region34: #{tpu_custom_call.1} parent=27 // pred_check_branch
          %288 = sbr.rel (%p286) target = $region36
        $region35: #{tpu_custom_call.1} parent=27 // pred_region
          %vm289 = vcmask 3072
          %290 = vst.msk [vmem:[%s276] sm:$0xf] %vm289, 0.0
          %291 = vst.msk [vmem:[%s280] sm:$0xf] %vm289, 0.0
          %292 = vst.msk [vmem:[%s284] sm:$0xf] %vm289, 0.0
        $region36: #{tpu_custom_call.1} parent=27 // pred_fallthru
          _
        %v293 = vld [vmem:[%s223] sm:$0xff]
        %v294 = vld [vmem:[%s271] sm:$0x3]
        %v295 = vunpack.c.0.s8 %v294
        %v296 = vlaneseq
        %v297 = vshrl.u32 %v296, 7
        %v298 = vlaneseq
        %v299 = vshrl.u32 %v298, 7
        %v300 = vsub.s32 0, %v299
        %v301 = vrot.slane %v295, %v300
        %v302 = vlaneseq
        %v303 = vshrl.u32 %v302, 7
        %v304 = vsub.s32 4, %v303
        %v305 = vrot.slane %v295, %v304
        %v306 = vlaneseq
        %v307 = vshrl.u32 %v306, 7
        %v308 = vsub.s32 0, %v307
        %v309 = vrot.slane %v301, %v308
        %v310 = vlaneseq
        %v311 = vshrl.u32 %v310, 7
        %v312 = vsub.s32 0, %v311
        %v313 = vrot.slane %v305, %v312
        %vm314 = vcmp.eq.s32.totalorder %v309, %v297
        %vm315 = vcmp.eq.s32.totalorder %v313, %v297
        %v316 = vsel %vm314, 1, 0
        %v317 = vsel %vm315, 1, 0
        %v318 = vcvt.s32.f32 %v316
        %v319 = vcvt.s32.f32 %v317
        %v320 = vld [vmem:[%s276] sm:$0xf]
        %v323 = vcombine.low %v318, %v319
        %v325 = vmul.f32 %v293, %v323
        %v327 = vcombine.high %v325, %v325
        %vm329 = vcmask 1043456
        %v330 = vsel %vm329, %v325, 0.0
        %v331 = vsel %vm329, %v327, 0.0
        %v332 = vadd.f32 %v330, %v331
        %333 = vadd.xlane.f32.xlu0 %v332
        %v334 = vpop.xlane.xlu0 %333
        %v335 = vadd.f32 %v320, %v334
        %vm336 = vcmask 3072
        %337 = vst.msk [vmem:[%s276] sm:$0xf] %vm336, %v335
        %v338 = vld [vmem:[%s280] sm:$0xf]
        %v339 = vmul.f32 %v293, %v293
        %v341 = vcombine.high %v339, %v339
        %v343 = vsel %vm329, %v339, 0.0
        %v344 = vsel %vm329, %v341, 0.0
        %v345 = vadd.f32 %v343, %v344
        %346 = vadd.xlane.f32.xlu0 %v345
        %v347 = vpop.xlane.xlu0 %346
        %v348 = vadd.f32 %v338, %v347
        %349 = vst.msk [vmem:[%s280] sm:$0xf] %vm336, %v348
        %v350 = vld [vmem:[%s284] sm:$0xf]
        %v351 = vsel %vm329, %v318, 0.0
        %v352 = vsel %vm329, %v319, 0.0
        %v353 = vadd.f32 %v351, %v352
        %354 = vadd.xlane.f32.xlu0 %v353
        %v355 = vpop.xlane.xlu0 %354
        %v356 = vadd.f32 %v350, %v355
        %357 = vst.msk [vmem:[%s284] sm:$0xf] %vm336, %v356
        %p358 = scmp.lt.s32.totalorder %s23, 1
        %s359 = scalar_select %p358, %s23, 1
        %s360 = smul.addr %s359, 4
        %s361 = scalar_lea.vmem %s2, %s360
        %p362 = scmp.lt.s32.totalorder %s23, 1
        %s363 = scalar_select %p362, %s23, 1
        %s364 = smul.addr %s363, 4
        %s365 = scalar_lea.vmem %s3, %s364
        %p366 = scmp.lt.s32.totalorder %s23, 1
        %s367 = scalar_select %p366, %s23, 1
        %s368 = smul.addr %s367, 4
        %s369 = scalar_lea.vmem %s4, %s368
        // Predicated region
        $region37: #{tpu_custom_call.1} parent=27 // pred_check
          %p370 = pneg %p105
        $region38: #{tpu_custom_call.1} parent=27 // pred_check_branch
          %372 = sbr.rel (%p370) target = $region40
        $region39: #{tpu_custom_call.1} parent=27 // pred_region
          _
        $region40: #{tpu_custom_call.1} parent=27 // pred_fallthru
          _
        // Predicated region
        $region41: #{tpu_custom_call.1} parent=27 // pred_check
          %p373 = pneg %p131
        $region42: #{tpu_custom_call.1} parent=27 // pred_check_branch
          %375 = sbr.rel (%p373) target = $region44
        $region43: #{tpu_custom_call.1} parent=27 // pred_region
          _
        $region44: #{tpu_custom_call.1} parent=27 // pred_fallthru
          _
        // Predicated region
        $region45: #{tpu_custom_call.1} parent=27 // pred_check
          %p376 = pneg %p157
        $region46: #{tpu_custom_call.1} parent=27 // pred_check_branch
          %378 = sbr.rel (%p376) target = $region48
        $region47: #{tpu_custom_call.1} parent=27 // pred_region
          _
        $region48: #{tpu_custom_call.1} parent=27 // pred_fallthru
          _
      $region28: #{tpu_custom_call.1} parent=5 // pred_fallthru
        _
      %p379 = scmp.le.s32.totalorder 2, %s14
      // Predicated region
      $region49: #{tpu_custom_call.1} parent=5 // pred_check
        %p380 = pneg %p379
      $region50: #{tpu_custom_call.1} parent=5 // pred_check_branch
        %382 = sbr.rel (%p380) target = $region52
      $region51: #{tpu_custom_call.1} parent=5 // pred_region
        %s383 = ssub.s32 %s14, 2
        // Predicated region
        $region53: #{tpu_custom_call.1} parent=51 // pred_check
          %p384 = pneg %p111
        $region54: #{tpu_custom_call.1} parent=51 // pred_check_branch
          %386 = sbr.rel (%p384) target = $region56
        $region55: #{tpu_custom_call.1} parent=51 // pred_region
          %p387 = scmp.lt.s32.totalorder %s25, 1
          %s388 = scalar_select %p387, %s25, 1
          %s389 = smul.addr %s388, 4
          %s390 = scalar_lea.vmem %s2, %s389
        $region56: #{tpu_custom_call.1} parent=51 // pred_fallthru
          _
        // Predicated region
        $region57: #{tpu_custom_call.1} parent=51 // pred_check
          %p391 = pneg %p137
        $region58: #{tpu_custom_call.1} parent=51 // pred_check_branch
          %393 = sbr.rel (%p391) target = $region60
        $region59: #{tpu_custom_call.1} parent=51 // pred_region
          %p394 = scmp.lt.s32.totalorder %s25, 1
          %s395 = scalar_select %p394, %s25, 1
          %s396 = smul.addr %s395, 4
          %s397 = scalar_lea.vmem %s3, %s396
        $region60: #{tpu_custom_call.1} parent=51 // pred_fallthru
          _
        // Predicated region
        $region61: #{tpu_custom_call.1} parent=51 // pred_check
          %p398 = pneg %p163
        $region62: #{tpu_custom_call.1} parent=51 // pred_check_branch
          %400 = sbr.rel (%p398) target = $region64
        $region63: #{tpu_custom_call.1} parent=51 // pred_region
          %p401 = scmp.lt.s32.totalorder %s25, 1
          %s402 = scalar_select %p401, %s25, 1
          %s403 = smul.addr %s402, 4
          %s404 = scalar_lea.vmem %s4, %s403
        $region64: #{tpu_custom_call.1} parent=51 // pred_fallthru
          _
      $region52: #{tpu_custom_call.1} parent=5 // pred_fallthru
        _
    $region6: #{tpu_custom_call.1} parent=1 // loop_footer
      %s18 = sadd.s32 1, %s14
    $region7: #{tpu_custom_call.1} parent=1 // loop_footer_branch
      %13 = sbr.rel target = $region3
    $region8: #{tpu_custom_call.1} parent=1 // loop_exit
      _
    %405 = vsyncpa [#allocation3], 1
    %s406 = scalar_lea.sflag [#allocation3], 1
    %407 = vsyncpa %s406, 1

</llo_original>
